<compile_context>
chip_gen: v6e
topology: v6e:2x2x1
jax: 0.10.0
libtpu: 0.0.40
codegen_flags: <defaults>
</compile_context>

<pallas_src>
import functools

import jax
import jax.numpy as jnp
from jax.experimental import pallas as pl
from jax.experimental.pallas import tpu as pltpu

_LANE = 128
_SUBLANE_BF16 = 16


def _round_up(x, m):
    return ((x + m - 1) // m) * m


def _pick_tanh_dtype():
    # bf16 transcendentals only on v6e / v7x; f32 is always safe.
    try:
        kind = jax.devices()[0].device_kind.lower()
    except Exception:
        kind = ""
    if ("v6" in kind) or ("v7" in kind) or ("tpu7" in kind):
        return jnp.bfloat16
    return jnp.float32


def _fcnn_kernel(x_ref, w1_ref, b1_ref, w2_ref, b2_ref, w3_ref, b3_ref, o_ref,
                 *, tanh_dtype):
    # Fused hot path: 3 matmuls + 2 tanh on the current batch tile, all in VMEM.
    # MXU consumes native (bf16) operands; accumulation is f32.
    x = x_ref[...]

    h = jnp.dot(x, w1_ref[...], preferred_element_type=jnp.float32)
    h = jnp.tanh((h + b1_ref[...].astype(jnp.float32)).astype(tanh_dtype))
    h = h.astype(w2_ref.dtype)

    h = jnp.dot(h, w2_ref[...], preferred_element_type=jnp.float32)
    h = jnp.tanh((h + b2_ref[...].astype(jnp.float32)).astype(tanh_dtype))
    h = h.astype(w3_ref.dtype)

    out = jnp.dot(h, w3_ref[...], preferred_element_type=jnp.float32)
    out = out + b3_ref[...].astype(jnp.float32)
    o_ref[...] = out.astype(o_ref.dtype)


def prepare_fcnn_params(params, compute_dtype=jnp.bfloat16):
    """One-time parameter prep: cast to compute dtype and pad.

    Hoisted out of the forward call so the per-call hot path contains no weight
    padding/cast ops.  W_l = [fan_in, fan_out], b_l = [1, fan_out].
    """
    w1, b1 = params["w1"], params["b1"]
    w2, b2 = params["w2"], params["b2"]
    w3, b3 = params["w3"], params["b3"]

    in_dim, hidden_dim = w1.shape
    out_dim = w3.shape[1]

    in_p = _round_up(in_dim, _SUBLANE_BF16)   # sublane pad only (K dim)
    hid_p = _round_up(hidden_dim, _LANE)      # lane-dense hidden
    out_p = _round_up(out_dim, _LANE)         # lane-dense output store

    def pad2(a, rows, cols):
        a = a.astype(compute_dtype)
        return jnp.pad(a, ((0, rows - a.shape[0]), (0, cols - a.shape[1])))

    prep = dict(
        w1=pad2(w1, in_p, hid_p), b1=pad2(b1.reshape(1, -1), 1, hid_p),
        w2=pad2(w2, hid_p, hid_p), b2=pad2(b2.reshape(1, -1), 1, hid_p),
        w3=pad2(w3, hid_p, out_p), b3=pad2(b3.reshape(1, -1), 1, out_p),
    )
    meta = dict(in_dim=in_dim, hidden_dim=hidden_dim, out_dim=out_dim,
                in_p=in_p, hid_p=hid_p, out_p=out_p,
                compute_dtype=compute_dtype)
    return prep, meta


def _choose_batch_tile(B, requested):
    # Large tiles amortize per-grid-step overhead, but keep >= 2 grid steps when
    # the batch allows it so v7x's two TensorCores both get work.
    if B >= 512:
        bt = min(requested, _round_up(pl.cdiv(B, 2), 256))
    else:
        bt = min(requested, _round_up(B, 8))
    return max(bt, 8)


def fcnn_forward(x, prep, meta, *, batch_tile=1024, out_dtype=None,
                 tanh_dtype=None):
    """x: [B, in_dim] (any float dtype). prep/meta from prepare_fcnn_params."""
    B, in_dim = x.shape
    assert in_dim == meta["in_dim"], "input feature dim mismatch"
    in_p, hid_p, out_p = meta["in_p"], meta["hid_p"], meta["out_p"]
    cdt = meta["compute_dtype"]
    out_dtype = out_dtype or x.dtype
    if tanh_dtype is None:
        tanh_dtype = _pick_tanh_dtype()

    bt = _choose_batch_tile(B, batch_tile)
    b_p = _round_up(B, bt)
    grid = (b_p // bt,)

    # Only x needs per-call prep: cast to compute dtype, pad last tile / tiny K.
    x_p = x.astype(cdt)
    if (b_p != B) or (in_p != in_dim):
        x_p = jnp.pad(x_p, ((0, b_p - B), (0, in_p - in_dim)))

    # VMEM footprint -> scoped limit (explicit: v5e default is only 16 MiB).
    wsize = jnp.dtype(cdt).itemsize
    osize = jnp.dtype(out_dtype).itemsize
    resident_bytes = (in_p * hid_p + hid_p * hid_p + hid_p * out_p
                      + 2 * hid_p + out_p) * wsize
    stream_bytes = 2 * bt * (in_p * wsize + out_p * osize)   # double-buffered
    interm_bytes = 2 * bt * hid_p * 4                        # f32 intermediates
    need = resident_bytes + stream_bytes + interm_bytes
    vmem_limit = int(min(max(2 * need, 16 * 2**20), 56 * 2**20))
    # TODO(synk): if resident_bytes ever approaches ~48 MiB (huge hidden_dim on
    # v7x's 64 MiB VMEM), switch to a hid-tiled reduction grid axis instead of
    # Buffered(1) weight residency.

    # Weights/biases: constant block index -> VMEM-resident, single-buffered.
    resident = dict(pipeline_mode=pl.Buffered(1))

    kernel = functools.partial(_fcnn_kernel, tanh_dtype=tanh_dtype)

    out_padded = pl.pallas_call(
        kernel,
        out_shape=jax.ShapeDtypeStruct((b_p, out_p), out_dtype),
        grid_spec=pltpu.PrefetchScalarGridSpec(
            num_scalar_prefetch=0,
            grid=grid,
            in_specs=[
                # streamed batch tile of x (double-buffered by the pipeline)
                pl.BlockSpec((bt, in_p), lambda i: (i, 0)),
                # resident weights / biases
                pl.BlockSpec((in_p, hid_p), lambda i: (0, 0), **resident),
                pl.BlockSpec((1, hid_p), lambda i: (0, 0), **resident),
                pl.BlockSpec((hid_p, hid_p), lambda i: (0, 0), **resident),
                pl.BlockSpec((1, hid_p), lambda i: (0, 0), **resident),
                pl.BlockSpec((hid_p, out_p), lambda i: (0, 0), **resident),
                pl.BlockSpec((1, out_p), lambda i: (0, 0), **resident),
            ],
            out_specs=pl.BlockSpec((bt, out_p), lambda i: (i, 0)),
        ),
        compiler_params=pltpu.CompilerParams(
            dimension_semantics=("parallel",),
            vmem_limit_bytes=vmem_limit,
        ),
    )(x_p, prep["w1"], prep["b1"], prep["w2"], prep["b2"],
      prep["w3"], prep["b3"])

    # Strip batch / output-lane padding.
    return out_padded[:B, :meta["out_dim"]]


def init_params(key, in_dim, hidden_dim, out_dim, dtype=jnp.float32):
    """Deterministic synthetic parameters (PyTorch Linear shapes, transposed)."""
    ks = jax.random.split(key, 6)
    # PyTorch nn.Linear(in, out) weight is [out, in]; we store [in, out].
    w1 = jax.random.normal(ks[0], (in_dim, hidden_dim), dtype) * 0.1
    b1 = jax.random.normal(ks[1], (1, hidden_dim), dtype) * 0.1
    w2 = jax.random.normal(ks[2], (hidden_dim, hidden_dim), dtype) * 0.1
    b2 = jax.random.normal(ks[3], (1, hidden_dim), dtype) * 0.1
    w3 = jax.random.normal(ks[4], (hidden_dim, out_dim), dtype) * 0.1
    b3 = jax.random.normal(ks[5], (1, out_dim), dtype) * 0.1
    return dict(w1=w1, b1=b1, w2=w2, b2=b2, w3=w3, b3=b3)


def fcnn_reference(x, p, compute_dtype=jnp.bfloat16):
    """Pure-JAX reference mirroring the kernel's bf16 operand quantization."""
    f32 = jnp.float32
    hp = jax.lax.Precision.HIGHEST

    def q(a):
        return a.astype(compute_dtype).astype(f32)

    h = jnp.tanh(jnp.dot(q(x), q(p["w1"]), precision=hp) + q(p["b1"]))
    h = q(h)
    h = jnp.tanh(jnp.dot(h, q(p["w2"]), precision=hp) + q(p["b2"]))
    h = q(h)
    out = jnp.dot(h, q(p["w3"]), precision=hp) + q(p["b3"])
    return out.astype(x.dtype)


if __name__ == "__main__":
    key = jax.random.PRNGKey(0)
    kx, kp = jax.random.split(key)

    # Small, module-consistent shapes; B=512 -> tile 256, a 2-step parallel grid.
    B, in_dim, hidden_dim, out_dim = 512, 4, 32, 2
    x = jax.random.normal(kx, (B, in_dim), jnp.float32)
    params = init_params(kp, in_dim, hidden_dim, out_dim)

    prep, meta = prepare_fcnn_params(params)          # one-time param prep
    out = fcnn_forward(x, prep, meta, batch_tile=1024)
    out = jax.block_until_ready(out)

    ref = fcnn_reference(x, params)
    assert out.shape == (B, out_dim)
    # bf16 operands + (possibly) bf16 tanh vs f32-tanh reference on bf16-quantized
    # inputs: differences stay well inside 2e-2.
    assert jnp.allclose(out, ref, atol=2e-2, rtol=2e-2), "mismatch vs reference"

    print("KERNEL_OK")
</pallas_src>

<mosaic_0001>
module attributes {stable_mosaic.version = 11 : i64} {
  func.func @_fcnn_kernel(%arg0: i32, %arg1: memref<256x16xbf16, #tpu.memory_space<vmem>>, %arg2: memref<16x128xbf16, #tpu.memory_space<vmem>>, %arg3: memref<1x128xbf16, #tpu.memory_space<vmem>>, %arg4: memref<128x128xbf16, #tpu.memory_space<vmem>>, %arg5: memref<1x128xbf16, #tpu.memory_space<vmem>>, %arg6: memref<128x128xbf16, #tpu.memory_space<vmem>>, %arg7: memref<1x128xbf16, #tpu.memory_space<vmem>>, %arg8: memref<256x128xf32, #tpu.memory_space<vmem>>) attributes {dimension_semantics = [#tpu.dimension_semantics<parallel>], iteration_bounds = array<i64: 2>, scalar_prefetch = 0 : i64, scratch_operands = 0 : i64, tpu.core_type = #tpu.core_type<tc>, window_params = [{transform_indices = @transform_0, window_bounds = array<i64: 256, 16>}, {pipeline_mode = #tpu.pipeline_mode<synchronous>, transform_indices = @transform_1, window_bounds = array<i64: 16, 128>}, {pipeline_mode = #tpu.pipeline_mode<synchronous>, transform_indices = @transform_2, window_bounds = array<i64: 1, 128>}, {pipeline_mode = #tpu.pipeline_mode<synchronous>, transform_indices = @transform_3, window_bounds = array<i64: 128, 128>}, {pipeline_mode = #tpu.pipeline_mode<synchronous>, transform_indices = @transform_4, window_bounds = array<i64: 1, 128>}, {pipeline_mode = #tpu.pipeline_mode<synchronous>, transform_indices = @transform_5, window_bounds = array<i64: 128, 128>}, {pipeline_mode = #tpu.pipeline_mode<synchronous>, transform_indices = @transform_6, window_bounds = array<i64: 1, 128>}, {transform_indices = @transform_7, window_bounds = array<i64: 256, 128>}]} {
    %c0 = arith.constant 0 : index
    %c0_0 = arith.constant 0 : index
    %0 = vector.load %arg1[%c0, %c0_0] : memref<256x16xbf16, #tpu.memory_space<vmem>>, vector<256x16xbf16>
    %c0_1 = arith.constant 0 : index
    %c0_2 = arith.constant 0 : index
    %1 = vector.load %arg2[%c0_1, %c0_2] : memref<16x128xbf16, #tpu.memory_space<vmem>>, vector<16x128xbf16>
    %cst = arith.constant dense<0.000000e+00> : vector<256x128xf32>
    %2 = tpu.matmul %0, %1, %cst {dimension_numbers = #tpu.dot_dimension_numbers<[1], [0], [0], [1], [0, 0, 1, 1], [], []>} : vector<256x16xbf16>, vector<16x128xbf16>, vector<256x128xf32> -> vector<256x128xf32>
    %c0_3 = arith.constant 0 : index
    %c0_4 = arith.constant 0 : index
    %3 = vector.load %arg3[%c0_3, %c0_4] : memref<1x128xbf16, #tpu.memory_space<vmem>>, vector<1x128xbf16>
    %4 = arith.extf %3 : vector<1x128xbf16> to vector<1x128xf32>
    %5 = vector.broadcast %4 : vector<1x128xf32> to vector<256x128xf32>
    %6 = arith.addf %2, %5 : vector<256x128xf32>
    %7 = math.tanh %6 : vector<256x128xf32>
    %8 = arith.truncf %7 : vector<256x128xf32> to vector<256x128xbf16>
    %c0_5 = arith.constant 0 : index
    %c0_6 = arith.constant 0 : index
    %9 = vector.load %arg4[%c0_5, %c0_6] : memref<128x128xbf16, #tpu.memory_space<vmem>>, vector<128x128xbf16>
    %cst_7 = arith.constant dense<0.000000e+00> : vector<256x128xf32>
    %10 = tpu.matmul %8, %9, %cst_7 {dimension_numbers = #tpu.dot_dimension_numbers<[1], [0], [0], [1], [0, 0, 1, 1], [], []>} : vector<256x128xbf16>, vector<128x128xbf16>, vector<256x128xf32> -> vector<256x128xf32>
    %c0_8 = arith.constant 0 : index
    %c0_9 = arith.constant 0 : index
    %11 = vector.load %arg5[%c0_8, %c0_9] : memref<1x128xbf16, #tpu.memory_space<vmem>>, vector<1x128xbf16>
    %12 = arith.extf %11 : vector<1x128xbf16> to vector<1x128xf32>
    %13 = vector.broadcast %12 : vector<1x128xf32> to vector<256x128xf32>
    %14 = arith.addf %10, %13 : vector<256x128xf32>
    %15 = math.tanh %14 : vector<256x128xf32>
    %16 = arith.truncf %15 : vector<256x128xf32> to vector<256x128xbf16>
    %c0_10 = arith.constant 0 : index
    %c0_11 = arith.constant 0 : index
    %17 = vector.load %arg6[%c0_10, %c0_11] : memref<128x128xbf16, #tpu.memory_space<vmem>>, vector<128x128xbf16>
    %cst_12 = arith.constant dense<0.000000e+00> : vector<256x128xf32>
    %18 = tpu.matmul %16, %17, %cst_12 {dimension_numbers = #tpu.dot_dimension_numbers<[1], [0], [0], [1], [0, 0, 1, 1], [], []>} : vector<256x128xbf16>, vector<128x128xbf16>, vector<256x128xf32> -> vector<256x128xf32>
    %c0_13 = arith.constant 0 : index
    %c0_14 = arith.constant 0 : index
    %19 = vector.load %arg7[%c0_13, %c0_14] : memref<1x128xbf16, #tpu.memory_space<vmem>>, vector<1x128xbf16>
    %20 = arith.extf %19 : vector<1x128xbf16> to vector<1x128xf32>
    %21 = vector.broadcast %20 : vector<1x128xf32> to vector<256x128xf32>
    %22 = arith.addf %18, %21 : vector<256x128xf32>
    %c0_15 = arith.constant 0 : index
    %c0_16 = arith.constant 0 : index
    %23 = vector.load %arg8[%c0_15, %c0_16] : memref<256x128xf32, #tpu.memory_space<vmem>>, vector<256x128xf32>
    tpu.vector_store %arg8[%c0_15, %c0_16], %22 {strides = array<i32>} : memref<256x128xf32, #tpu.memory_space<vmem>>, vector<256x128xf32>,
    return
  }
  func.func @transform_0(%arg0: i32) -> (i32, i32) {
    %c0_i32 = arith.constant 0 : i32
    %c0_i32_0 = arith.constant 0 : i32
    return %arg0, %c0_i32 : i32, i32
  }
  func.func @transform_1(%arg0: i32) -> (i32, i32) {
    %c0_i32 = arith.constant 0 : i32
    %c0_i32_0 = arith.constant 0 : i32
    %c0_i32_1 = arith.constant 0 : i32
    return %c0_i32, %c0_i32_0 : i32, i32
  }
  func.func @transform_2(%arg0: i32) -> (i32, i32) {
    %c0_i32 = arith.constant 0 : i32
    %c0_i32_0 = arith.constant 0 : i32
    %c0_i32_1 = arith.constant 0 : i32
    return %c0_i32, %c0_i32_0 : i32, i32
  }
  func.func @transform_3(%arg0: i32) -> (i32, i32) {
    %c0_i32 = arith.constant 0 : i32
    %c0_i32_0 = arith.constant 0 : i32
    %c0_i32_1 = arith.constant 0 : i32
    return %c0_i32, %c0_i32_0 : i32, i32
  }
  func.func @transform_4(%arg0: i32) -> (i32, i32) {
    %c0_i32 = arith.constant 0 : i32
    %c0_i32_0 = arith.constant 0 : i32
    %c0_i32_1 = arith.constant 0 : i32
    return %c0_i32, %c0_i32_0 : i32, i32
  }
  func.func @transform_5(%arg0: i32) -> (i32, i32) {
    %c0_i32 = arith.constant 0 : i32
    %c0_i32_0 = arith.constant 0 : i32
    %c0_i32_1 = arith.constant 0 : i32
    return %c0_i32, %c0_i32_0 : i32, i32
  }
  func.func @transform_6(%arg0: i32) -> (i32, i32) {
    %c0_i32 = arith.constant 0 : i32
    %c0_i32_0 = arith.constant 0 : i32
    %c0_i32_1 = arith.constant 0 : i32
    return %c0_i32, %c0_i32_0 : i32, i32
  }
  func.func @transform_7(%arg0: i32) -> (i32, i32) {
    %c0_i32 = arith.constant 0 : i32
    %c0_i32_0 = arith.constant 0 : i32
    return %arg0, %c0_i32 : i32, i32
  }
}

</mosaic_0001>

<llo_original>
// kernel: tpu_custom_call.1
$region0: #{tpu_custom_call.1}
  #allocation0 [shape = 'u32[]', space=smem, size = 0x4, offset = 0x4, fixed_abs, tag = 'smem constant byte address 0x4 - core index']
  #allocation1 [shape = 'u32[144,128]{1,0:T(1,128)}', space=vmem, size = 0x12000, scoped, tag = 'internal scratch']
  %s0 = inlined_call_operand.vmem [shape: bf16[512,16], index: 0, kind: input, shape index: {}]
  %s1 = inlined_call_operand.vmem [shape: bf16[16,128], index: 1, kind: input, shape index: {}]
  %s2 = inlined_call_operand.vmem [shape: bf16[1,128], index: 2, kind: input, shape index: {}]
  %s3 = inlined_call_operand.vmem [shape: bf16[128,128], index: 3, kind: input, shape index: {}]
  %s4 = inlined_call_operand.vmem [shape: bf16[1,128], index: 4, kind: input, shape index: {}]
  %s5 = inlined_call_operand.vmem [shape: bf16[128,128], index: 5, kind: input, shape index: {}]
  %s6 = inlined_call_operand.vmem [shape: bf16[1,128], index: 6, kind: input, shape index: {}]
  %s7 = inlined_call_operand.hbm [shape: f32[512,128], index: 7, kind: output, shape index: {}]
  %s8 = sld [smem:[#allocation0]]
  $region61: #{tpu_custom_call.1} parent=0
    _
  %s10 = ssub.s32 1, %s8
  %s11 = scalar_select 0, %s10, %s8
  $region1: #{tpu_custom_call.1} parent=0
    #allocation2 [shape = 'u8[262144]{0}', space=vmem, size = 0x40000, scoped, tag = 'output window, operand 0']
    #allocation3 [shape = 's32[2]{0}', space=sflag, size = 0x8, scoped, tag = 'scoped memory for tpu_custom_call.1']
    %12 = vsyncpa [#allocation3], 0
    %s13 = scalar_lea.sflag [#allocation3], 1
    %14 = vsyncpa %s13, 0
    loop: start=0, step=1, limit=4
    $region2: #{tpu_custom_call.1} parent=1 // loop_pre_header
      _
    $region3: #{tpu_custom_call.1} parent=1 // loop_header
      %s16 = sphi 0, %s20
      %p17 = scmp.ge.s32.totalorder %s16, 4
      %s26 = sphi 0, %s28
      %s29 = sphi 0, %s26
      %s30 = sphi 0, %s29
      %s46 = sphi 0, %s30
      %s50 = sphi 0, %s50
      %s52 = sphi 0, %s50
      %s53 = sphi 0, %s52
      %s67 = sphi 0, %s53
      %s71 = sphi 0, %s71
      %s73 = sphi 0, %s71
      %s74 = sphi 0, %s73
      %s88 = sphi 0, %s74
      %s92 = sphi 0, %s92
      %s94 = sphi 0, %s92
      %s95 = sphi 0, %s94
      %s109 = sphi 0, %s95
      %s113 = sphi 0, %s113
      %s115 = sphi 0, %s113
      %s116 = sphi 0, %s115
      %s130 = sphi 0, %s116
      %s134 = sphi 0, %s134
      %s136 = sphi 0, %s134
      %s137 = sphi 0, %s136
      %s151 = sphi 0, %s137
      %s155 = sphi 0, %s155
      %s157 = sphi 0, %s155
      %s158 = sphi 0, %s157
      %s172 = sphi 0, %s158
      %s178 = sphi 0, %s180
      %s181 = sphi 0, %s178
      %s182 = sphi 0, %s181
      %s198 = sphi 0, %s182
    $region4: #{tpu_custom_call.1} parent=1 // loop_header_branch
      %19 = sbr.rel (%p17) target = $region8
    $region5: #{tpu_custom_call.1} parent=1 // loop_body
      %s21 = ssub.s32 %s16, 1
      %s22 = ssub.s32 %s16, 2
      %s23 = sadd.s32 %s16, 1
      %s24 = ssub.s32 %s16, %s23
      %p25 = scmp.eq.s32.totalorder %s24, 0
      %s27 = sadd.s32 %s26, 1
      %s28 = scalar_select %p25, %s26, %s27
      %p31 = pneg %p25
      %p32 = scmp.eq.s32.totalorder %s16, 1
      %p33 = por %p31, %p32
      %p34 = scmp.ne.s32.totalorder %s26, %s29
      %p35 = scmp.eq.s32.totalorder %s16, 0
      %p36 = por %p34, %p35
      %p37 = scmp.ne.s32.totalorder %s26, %s29
      %p38 = scmp.eq.s32.totalorder %s21, 1
      %p39 = por %p37, %p38
      %p40 = scmp.ne.s32.totalorder %s29, %s30
      %p41 = scmp.eq.s32.totalorder %s21, 0
      %p42 = por %p40, %p41
      %p43 = scmp.ne.s32.totalorder %s29, %s30
      %p44 = scmp.eq.s32.totalorder %s22, 1
      %p45 = por %p43, %p44
      %p47 = scmp.ne.s32.totalorder %s30, %s46
      %p48 = scmp.eq.s32.totalorder %s22, 0
      %p49 = por %p47, %p48
      %s51 = sadd.s32 %s50, 1
      %p54 = scmp.eq.s32.totalorder %s16, 1
      %p55 = scmp.ne.s32.totalorder %s50, %s52
      %p56 = scmp.eq.s32.totalorder %s16, 0
      %p57 = por %p55, %p56
      %p58 = scmp.ne.s32.totalorder %s50, %s52
      %p59 = scmp.eq.s32.totalorder %s21, 1
      %p60 = por %p58, %p59
      %p61 = scmp.ne.s32.totalorder %s52, %s53
      %p62 = scmp.eq.s32.totalorder %s21, 0
      %p63 = por %p61, %p62
      %p64 = scmp.ne.s32.totalorder %s52, %s53
      %p65 = scmp.eq.s32.totalorder %s22, 1
      %p66 = por %p64, %p65
      %p68 = scmp.ne.s32.totalorder %s53, %s67
      %p69 = scmp.eq.s32.totalorder %s22, 0
      %p70 = por %p68, %p69
      %s72 = sadd.s32 %s71, 1
      %p75 = scmp.eq.s32.totalorder %s16, 1
      %p76 = scmp.ne.s32.totalorder %s71, %s73
      %p77 = scmp.eq.s32.totalorder %s16, 0
      %p78 = por %p76, %p77
      %p79 = scmp.ne.s32.totalorder %s71, %s73
      %p80 = scmp.eq.s32.totalorder %s21, 1
      %p81 = por %p79, %p80
      %p82 = scmp.ne.s32.totalorder %s73, %s74
      %p83 = scmp.eq.s32.totalorder %s21, 0
      %p84 = por %p82, %p83
      %p85 = scmp.ne.s32.totalorder %s73, %s74
      %p86 = scmp.eq.s32.totalorder %s22, 1
      %p87 = por %p85, %p86
      %p89 = scmp.ne.s32.totalorder %s74, %s88
      %p90 = scmp.eq.s32.totalorder %s22, 0
      %p91 = por %p89, %p90
      %s93 = sadd.s32 %s92, 1
      %p96 = scmp.eq.s32.totalorder %s16, 1
      %p97 = scmp.ne.s32.totalorder %s92, %s94
      %p98 = scmp.eq.s32.totalorder %s16, 0
      %p99 = por %p97, %p98
      %p100 = scmp.ne.s32.totalorder %s92, %s94
      %p101 = scmp.eq.s32.totalorder %s21, 1
      %p102 = por %p100, %p101
      %p103 = scmp.ne.s32.totalorder %s94, %s95
      %p104 = scmp.eq.s32.totalorder %s21, 0
      %p105 = por %p103, %p104
      %p106 = scmp.ne.s32.totalorder %s94, %s95
      %p107 = scmp.eq.s32.totalorder %s22, 1
      %p108 = por %p106, %p107
      %p110 = scmp.ne.s32.totalorder %s95, %s109
      %p111 = scmp.eq.s32.totalorder %s22, 0
      %p112 = por %p110, %p111
      %s114 = sadd.s32 %s113, 1
      %p117 = scmp.eq.s32.totalorder %s16, 1
      %p118 = scmp.ne.s32.totalorder %s113, %s115
      %p119 = scmp.eq.s32.totalorder %s16, 0
      %p120 = por %p118, %p119
      %p121 = scmp.ne.s32.totalorder %s113, %s115
      %p122 = scmp.eq.s32.totalorder %s21, 1
      %p123 = por %p121, %p122
      %p124 = scmp.ne.s32.totalorder %s115, %s116
      %p125 = scmp.eq.s32.totalorder %s21, 0
      %p126 = por %p124, %p125
      %p127 = scmp.ne.s32.totalorder %s115, %s116
      %p128 = scmp.eq.s32.totalorder %s22, 1
      %p129 = por %p127, %p128
      %p131 = scmp.ne.s32.totalorder %s116, %s130
      %p132 = scmp.eq.s32.totalorder %s22, 0
      %p133 = por %p131, %p132
      %s135 = sadd.s32 %s134, 1
      %p138 = scmp.eq.s32.totalorder %s16, 1
      %p139 = scmp.ne.s32.totalorder %s134, %s136
      %p140 = scmp.eq.s32.totalorder %s16, 0
      %p141 = por %p139, %p140
      %p142 = scmp.ne.s32.totalorder %s134, %s136
      %p143 = scmp.eq.s32.totalorder %s21, 1
      %p144 = por %p142, %p143
      %p145 = scmp.ne.s32.totalorder %s136, %s137
      %p146 = scmp.eq.s32.totalorder %s21, 0
      %p147 = por %p145, %p146
      %p148 = scmp.ne.s32.totalorder %s136, %s137
      %p149 = scmp.eq.s32.totalorder %s22, 1
      %p150 = por %p148, %p149
      %p152 = scmp.ne.s32.totalorder %s137, %s151
      %p153 = scmp.eq.s32.totalorder %s22, 0
      %p154 = por %p152, %p153
      %s156 = sadd.s32 %s155, 1
      %p159 = scmp.eq.s32.totalorder %s16, 1
      %p160 = scmp.ne.s32.totalorder %s155, %s157
      %p161 = scmp.eq.s32.totalorder %s16, 0
      %p162 = por %p160, %p161
      %p163 = scmp.ne.s32.totalorder %s155, %s157
      %p164 = scmp.eq.s32.totalorder %s21, 1
      %p165 = por %p163, %p164
      %p166 = scmp.ne.s32.totalorder %s157, %s158
      %p167 = scmp.eq.s32.totalorder %s21, 0
      %p168 = por %p166, %p167
      %p169 = scmp.ne.s32.totalorder %s157, %s158
      %p170 = scmp.eq.s32.totalorder %s22, 1
      %p171 = por %p169, %p170
      %p173 = scmp.ne.s32.totalorder %s158, %s172
      %p174 = scmp.eq.s32.totalorder %s22, 0
      %p175 = por %p173, %p174
      %s176 = ssub.s32 %s16, %s23
      %p177 = scmp.eq.s32.totalorder %s176, 0
      %s179 = sadd.s32 %s178, 1
      %s180 = scalar_select %p177, %s178, %s179
      %p183 = pneg %p177
      %p184 = scmp.eq.s32.totalorder %s16, 1
      %p185 = por %p183, %p184
      %p186 = scmp.ne.s32.totalorder %s178, %s181
      %p187 = scmp.eq.s32.totalorder %s16, 0
      %p188 = por %p186, %p187
      %p189 = scmp.ne.s32.totalorder %s178, %s181
      %p190 = scmp.eq.s32.totalorder %s21, 1
      %p191 = por %p189, %p190
      %p192 = scmp.ne.s32.totalorder %s181, %s182
      %p193 = scmp.eq.s32.totalorder %s21, 0
      %p194 = por %p192, %p193
      %p195 = scmp.ne.s32.totalorder %s181, %s182
      %p196 = scmp.eq.s32.totalorder %s22, 1
      %p197 = por %p195, %p196
      %p199 = scmp.ne.s32.totalorder %s182, %s198
      %p200 = scmp.eq.s32.totalorder %s22, 0
      %p201 = por %p199, %p200
      %p202 = scmp.le.s32.totalorder 1, %s16
      %p203 = scmp.lt.s32.totalorder %s16, 3
      %p204 = pnand %p202, %p203
      %p205 = pneg %p204
      // Predicated region
      $region9: #{tpu_custom_call.1} parent=5 // pred_check
        _
      $region10: #{tpu_custom_call.1} parent=5 // pred_check_branch
        %207 = sbr.rel (%p204) target = $region12
      $region11: #{tpu_custom_call.1} parent=5 // pred_region
        %s208 = ssub.s32 %s16, 1
        // Predicated region
        $region13: #{tpu_custom_call.1} parent=11 // pred_check
          %p209 = pneg %p63
        $region14: #{tpu_custom_call.1} parent=11 // pred_check_branch
          %211 = sbr.rel (%p209) target = $region16
        $region15: #{tpu_custom_call.1} parent=11 // pred_region
          _
        $region16: #{tpu_custom_call.1} parent=11 // pred_fallthru
          _
        // Predicated region
        $region17: #{tpu_custom_call.1} parent=11 // pred_check
          %p212 = pneg %p84
        $region18: #{tpu_custom_call.1} parent=11 // pred_check_branch
          %214 = sbr.rel (%p212) target = $region20
        $region19: #{tpu_custom_call.1} parent=11 // pred_region
          _
        $region20: #{tpu_custom_call.1} parent=11 // pred_fallthru
          _
        // Predicated region
        $region21: #{tpu_custom_call.1} parent=11 // pred_check
          %p215 = pneg %p105
        $region22: #{tpu_custom_call.1} parent=11 // pred_check_branch
          %217 = sbr.rel (%p215) target = $region24
        $region23: #{tpu_custom_call.1} parent=11 // pred_region
          _
        $region24: #{tpu_custom_call.1} parent=11 // pred_fallthru
          _
        // Predicated region
        $region25: #{tpu_custom_call.1} parent=11 // pred_check
          %p218 = pneg %p126
        $region26: #{tpu_custom_call.1} parent=11 // pred_check_branch
          %220 = sbr.rel (%p218) target = $region28
        $region27: #{tpu_custom_call.1} parent=11 // pred_region
          _
        $region28: #{tpu_custom_call.1} parent=11 // pred_fallthru
          _
        // Predicated region
        $region29: #{tpu_custom_call.1} parent=11 // pred_check
          %p221 = pneg %p147
        $region30: #{tpu_custom_call.1} parent=11 // pred_check_branch
          %223 = sbr.rel (%p221) target = $region32
        $region31: #{tpu_custom_call.1} parent=11 // pred_region
          _
        $region32: #{tpu_custom_call.1} parent=11 // pred_fallthru
          _
        // Predicated region
        $region33: #{tpu_custom_call.1} parent=11 // pred_check
          %p224 = pneg %p168
        $region34: #{tpu_custom_call.1} parent=11 // pred_check_branch
          %226 = sbr.rel (%p224) target = $region36
        $region35: #{tpu_custom_call.1} parent=11 // pred_region
          _
        $region36: #{tpu_custom_call.1} parent=11 // pred_fallthru
          _
      $region12: #{tpu_custom_call.1} parent=5 // pred_fallthru
        _
      %p227 = scmp.lt.s32.totalorder %s16, 2
      // Predicated region
      $region37: #{tpu_custom_call.1} parent=5 // pred_check
        %p228 = pneg %p227
      $region38: #{tpu_custom_call.1} parent=5 // pred_check_branch
        %230 = sbr.rel (%p228) target = $region40
      $region39: #{tpu_custom_call.1} parent=5 // pred_region
        // Predicated region
        $region41: #{tpu_custom_call.1} parent=39 // pred_check
          %p231 = pneg %p36
        $region42: #{tpu_custom_call.1} parent=39 // pred_check_branch
          %233 = sbr.rel (%p231) target = $region44
        $region43: #{tpu_custom_call.1} parent=39 // pred_region
          %s234 = smul.u32 32, %s16
          %p235 = scmp.lt.s32.totalorder %s234, 63
          %s236 = scalar_select %p235, %s234, 63
          %s237 = smul.addr %s236, 4
          %s238 = scalar_lea.vmem %s0, %s237
          %s239 = smul.u32 32, %s16
        $region44: #{tpu_custom_call.1} parent=39 // pred_fallthru
          _
      $region40: #{tpu_custom_call.1} parent=5 // pred_fallthru
        _
      %p240 = scmp.le.s32.totalorder 1, %s16
      %p241 = scmp.lt.s32.totalorder %s16, 3
      %p242 = pnand %p240, %p241
      %p243 = pneg %p242
      // Predicated region
      $region45: #{tpu_custom_call.1} parent=5 // pred_check
        _
      $region46: #{tpu_custom_call.1} parent=5 // pred_check_branch
        %245 = sbr.rel (%p242) target = $region48
      $region47: #{tpu_custom_call.1} parent=5 // pred_region
        %s246 = ssub.s32 %s16, 1
        %s247 = smul.u32 32, %s21
        %p248 = scmp.lt.s32.totalorder %s247, 63
        %s249 = scalar_select %p248, %s247, 63
        %s250 = smul.addr %s249, 4
        %s251 = scalar_lea.vmem %s0, %s250
        %p252 = pneg %p42
        %p253 = pneg %p39
        %p254 = pneg %p63
        %p255 = pneg %p60
        %p256 = pneg %p84
        %p257 = pneg %p81
        %p258 = pneg %p105
        %p259 = pneg %p102
        %p260 = pneg %p126
        %p261 = pneg %p123
        %p262 = pneg %p147
        %p263 = pneg %p144
        %p264 = pneg %p168
        %p265 = pneg %p165
        %p266 = pneg %p194
        %p267 = pneg %p191
        %s268 = sand.u32 %s181, 1
        %s269 = scalar_lea.sflag [#allocation3], %s268
        %s270 = sand.u32 %s181, 1
        %s271 = smul.addr %s270, 256
        %s272 = scalar_lea.vmem [#allocation2], %s271
        %s273 = smul.u32 32, %s21
        %p274 = scmp.lt.s32.totalorder %s273, 63
        %s275 = scalar_select %p274, %s273, 63
        %s276 = smul.addr %s275, 4
        %s277 = scalar_lea.vmem %s0, %s276
        %s278 = smul.u32 32, %s21
        %s279 = smul.u32 32, %s21
        %v281 = vld [vmem:[%s277] sm:$0xf]
        %v282 = vld [vmem:[%s277 + $0x4] sm:$0xf]
        %v283 = vld [vmem:[%s277 + $0x8] sm:$0xf]
        %v284 = vld [vmem:[%s277 + $0xc] sm:$0xf]
        %v285 = vld [vmem:[%s277 + $0x10] sm:$0xf]
        %v286 = vld [vmem:[%s277 + $0x14] sm:$0xf]
        %v287 = vld [vmem:[%s277 + $0x18] sm:$0xf]
        %v288 = vld [vmem:[%s277 + $0x1c] sm:$0xf]
        %v289 = vld [vmem:[%s277 + $0x20] sm:$0xf]
        %v290 = vld [vmem:[%s277 + $0x24] sm:$0xf]
        %v291 = vld [vmem:[%s277 + $0x28] sm:$0xf]
        %v292 = vld [vmem:[%s277 + $0x2c] sm:$0xf]
        %v293 = vld [vmem:[%s277 + $0x30] sm:$0xf]
        %v294 = vld [vmem:[%s277 + $0x34] sm:$0xf]
        %v295 = vld [vmem:[%s277 + $0x38] sm:$0xf]
        %v296 = vld [vmem:[%s277 + $0x3c] sm:$0xf]
        %v297 = vld [vmem:[%s277 + $0x40] sm:$0xf]
        %v298 = vld [vmem:[%s277 + $0x44] sm:$0xf]
        %v299 = vld [vmem:[%s277 + $0x48] sm:$0xf]
        %v300 = vld [vmem:[%s277 + $0x4c] sm:$0xf]
        %v301 = vld [vmem:[%s277 + $0x50] sm:$0xf]
        %v302 = vld [vmem:[%s277 + $0x54] sm:$0xf]
        %v303 = vld [vmem:[%s277 + $0x58] sm:$0xf]
        %v304 = vld [vmem:[%s277 + $0x5c] sm:$0xf]
        %v305 = vld [vmem:[%s277 + $0x60] sm:$0xf]
        %v306 = vld [vmem:[%s277 + $0x64] sm:$0xf]
        %v307 = vld [vmem:[%s277 + $0x68] sm:$0xf]
        %v308 = vld [vmem:[%s277 + $0x6c] sm:$0xf]
        %v309 = vld [vmem:[%s277 + $0x70] sm:$0xf]
        %v310 = vld [vmem:[%s277 + $0x74] sm:$0xf]
        %v311 = vld [vmem:[%s277 + $0x78] sm:$0xf]
        %v312 = vld [vmem:[%s277 + $0x7c] sm:$0xf]
        %v313 = vld [vmem:[%s1] sm:$0xf]
        %v314 = vld [vmem:[%s1 + $0x4] sm:$0xf]
        %v315 = vld [vmem:[%s2] sm:$0x1]
        %v316 = vunpack.c.l.bf16 %v315
        %v317 = vlaneseq
        %v318 = vshrl.u32 %v317, 7
        %v319 = vsub.s32 0, %v318
        %v320 = vrot.slane %v316, %v319
        %v353 = vunpack.c.l.b16 %v281
        %v354 = vunpack.c.l.b16 %v282
        %v355 = vunpack.c.l.b16 %v283
        %v356 = vunpack.c.l.b16 %v284
        %v357 = vunpack.c.l.b16 %v285
        %v358 = vunpack.c.l.b16 %v286
        %v359 = vunpack.c.l.b16 %v287
        %v360 = vunpack.c.l.b16 %v288
        %v361 = vunpack.c.l.b16 %v289
        %v362 = vunpack.c.l.b16 %v290
        %v363 = vunpack.c.l.b16 %v291
        %v364 = vunpack.c.l.b16 %v292
        %v365 = vunpack.c.l.b16 %v293
        %v366 = vunpack.c.l.b16 %v294
        %v367 = vunpack.c.l.b16 %v295
        %v368 = vunpack.c.l.b16 %v296
        %v369 = vunpack.c.l.b16 %v297
        %v370 = vunpack.c.l.b16 %v298
        %v371 = vunpack.c.l.b16 %v299
        %v372 = vunpack.c.l.b16 %v300
        %v373 = vunpack.c.l.b16 %v301
        %v374 = vunpack.c.l.b16 %v302
        %v375 = vunpack.c.l.b16 %v303
        %v376 = vunpack.c.l.b16 %v304
        %v377 = vunpack.c.l.b16 %v305
        %v378 = vunpack.c.l.b16 %v306
        %v379 = vunpack.c.l.b16 %v307
        %v380 = vunpack.c.l.b16 %v308
        %v381 = vunpack.c.l.b16 %v309
        %v382 = vunpack.c.l.b16 %v310
        %v383 = vunpack.c.l.b16 %v311
        %v384 = vunpack.c.l.b16 %v312
        %v385 = vpack.c.b16 %v354, %v353
        %v386 = vpack.c.b16 %v356, %v355
        %v387 = vpack.c.b16 %v358, %v357
        %v388 = vpack.c.b16 %v360, %v359
        %v389 = vpack.c.b16 %v362, %v361
        %v390 = vpack.c.b16 %v364, %v363
        %v391 = vpack.c.b16 %v366, %v365
        %v392 = vpack.c.b16 %v368, %v367
        %v393 = vpack.c.b16 %v370, %v369
        %v394 = vpack.c.b16 %v372, %v371
        %v395 = vpack.c.b16 %v374, %v373
        %v396 = vpack.c.b16 %v376, %v375
        %v397 = vpack.c.b16 %v378, %v377
        %v398 = vpack.c.b16 %v380, %v379
        %v399 = vpack.c.b16 %v382, %v381
        %v400 = vpack.c.b16 %v384, %v383
        %v403 = vunpack.c.l.b16 %v313
        %v404 = vunpack.c.l.b16 %v314
        %v405 = vpack.c.b16 %v404, %v403
        %vm407 = vcmask 130048
        %v409 = vsel %vm407, %v385, 0
        %v412 = vsel %vm407, %v386, 0
        %v415 = vsel %vm407, %v387, 0
        %v418 = vsel %vm407, %v388, 0
        %v421 = vsel %vm407, %v389, 0
        %v424 = vsel %vm407, %v390, 0
        %v427 = vsel %vm407, %v391, 0
        %v430 = vsel %vm407, %v392, 0
        %v433 = vsel %vm407, %v393, 0
        %v436 = vsel %vm407, %v394, 0
        %v439 = vsel %vm407, %v395, 0
        %v442 = vsel %vm407, %v396, 0
        %v445 = vsel %vm407, %v397, 0
        %v448 = vsel %vm407, %v398, 0
        %v451 = vsel %vm407, %v399, 0
        %v454 = vsel %vm407, %v400, 0
        %456 = vmatprep.subr.bf16.mxu0 0
        %457 = vmatpush1.bf16.msra.mxu0 0
        %458 = vmatprep.subr.bf16.mxu0 0
        %459 = vmatpush1.bf16.msra.mxu0 0
        %460 = vmatprep.subr.bf16.mxu0 0
        %461 = vmatpush1.bf16.msra.mxu0 0
        %462 = vmatprep.subr.bf16.mxu0 0
        %463 = vmatpush1.bf16.msra.mxu0 0
        %464 = vmatprep.subr.bf16.mxu0 0
        %465 = vmatpush1.bf16.msra.mxu0 0
        %466 = vmatprep.subr.bf16.mxu0 0
        %467 = vmatpush1.bf16.msra.mxu0 0
        %468 = vmatprep.subr.bf16.mxu0 0
        %469 = vmatpush1.bf16.msra.mxu0 0
        %470 = vmatprep.subr.bf16.mxu0 0
        %471 = vmatpush1.bf16.msra.mxu0 %v405
        %472 = vmatprep.subr.bf16.mxu0 0
        %473 = vmatpush2.bf16.msra.mxu0 0
        %474 = vmatprep.subr.bf16.mxu0 0
        %475 = vmatpush2.bf16.msra.mxu0 0
        %476 = vmatprep.subr.bf16.mxu0 0
        %477 = vmatpush2.bf16.msra.mxu0 0
        %478 = vmatprep.subr.bf16.mxu0 0
        %479 = vmatpush2.bf16.msra.mxu0 0
        %480 = vmatprep.subr.bf16.mxu0 0
        %481 = vmatpush2.bf16.msra.mxu0 0
        %482 = vmatprep.subr.bf16.mxu0 0
        %483 = vmatpush2.bf16.msra.mxu0 0
        %484 = vmatprep.subr.bf16.mxu0 0
        %485 = vmatpush2.bf16.msra.mxu0 0
        %486 = vmatprep.subr.bf16.mxu0 0
        %487 = vmatpush2.bf16.msra.mxu0 0
        %488 = vmatprep.mubr.bf16.mxu0 0
        %489 = vmatmul.mubr.bf16.gmra.mxu0 %v409
        %v490 = vpop.f32.mrf.mxu0
        %v491 = vadd.f32 %v320, %v490
        %v492 = vpop.f32.mrf.mxu0
        %v493 = vpop.f32.mrf.mxu0
        %v494 = vadd.f32 %v320, %v493
        %v495 = vpop.f32.mrf.mxu0
        %496 = vmatprep.mubr.bf16.mxu0 0
        %497 = vmatmul.mubr.bf16.gmra.mxu0 %v412
        %v498 = vpop.f32.mrf.mxu0
        %v499 = vadd.f32 %v320, %v498
        %v500 = vpop.f32.mrf.mxu0
        %v501 = vpop.f32.mrf.mxu0
        %v502 = vadd.f32 %v320, %v501
        %v503 = vpop.f32.mrf.mxu0
        %504 = vmatprep.mubr.bf16.mxu0 0
        %505 = vmatmul.mubr.bf16.gmra.mxu0 %v415
        %v506 = vpop.f32.mrf.mxu0
        %v507 = vadd.f32 %v320, %v506
        %v508 = vpop.f32.mrf.mxu0
        %v509 = vpop.f32.mrf.mxu0
        %v510 = vadd.f32 %v320, %v509
        %v511 = vpop.f32.mrf.mxu0
        %512 = vmatprep.mubr.bf16.mxu0 0
        %513 = vmatmul.mubr.bf16.gmra.mxu0 %v418
        %v514 = vpop.f32.mrf.mxu0
        %v515 = vadd.f32 %v320, %v514
        %v516 = vpop.f32.mrf.mxu0
        %v517 = vpop.f32.mrf.mxu0
        %v518 = vadd.f32 %v320, %v517
        %v519 = vpop.f32.mrf.mxu0
        %520 = vmatprep.mubr.bf16.mxu0 0
        %521 = vmatmul.mubr.bf16.gmra.mxu0 %v421
        %v522 = vpop.f32.mrf.mxu0
        %v523 = vadd.f32 %v320, %v522
        %v524 = vpop.f32.mrf.mxu0
        %v525 = vpop.f32.mrf.mxu0
        %v526 = vadd.f32 %v320, %v525
        %v527 = vpop.f32.mrf.mxu0
        %528 = vmatprep.mubr.bf16.mxu0 0
        %529 = vmatmul.mubr.bf16.gmra.mxu0 %v424
        %v530 = vpop.f32.mrf.mxu0
        %v531 = vadd.f32 %v320, %v530
        %v532 = vpop.f32.mrf.mxu0
        %v533 = vpop.f32.mrf.mxu0
        %v534 = vadd.f32 %v320, %v533
        %v535 = vpop.f32.mrf.mxu0
        %536 = vmatprep.mubr.bf16.mxu0 0
        %537 = vmatmul.mubr.bf16.gmra.mxu0 %v427
        %v538 = vpop.f32.mrf.mxu0
        %v539 = vadd.f32 %v320, %v538
        %v540 = vpop.f32.mrf.mxu0
        %v541 = vpop.f32.mrf.mxu0
        %v542 = vadd.f32 %v320, %v541
        %v543 = vpop.f32.mrf.mxu0
        %544 = vmatprep.mubr.bf16.mxu0 0
        %545 = vmatmul.mubr.bf16.gmra.mxu0 %v430
        %v546 = vpop.f32.mrf.mxu0
        %v547 = vadd.f32 %v320, %v546
        %v548 = vpop.f32.mrf.mxu0
        %v549 = vpop.f32.mrf.mxu0
        %v550 = vadd.f32 %v320, %v549
        %v551 = vpop.f32.mrf.mxu0
        %552 = vmatprep.mubr.bf16.mxu0 0
        %553 = vmatmul.mubr.bf16.gmra.mxu0 %v433
        %v554 = vpop.f32.mrf.mxu0
        %v555 = vadd.f32 %v320, %v554
        %v556 = vpop.f32.mrf.mxu0
        %v557 = vpop.f32.mrf.mxu0
        %v558 = vadd.f32 %v320, %v557
        %v559 = vpop.f32.mrf.mxu0
        %560 = vmatprep.mubr.bf16.mxu0 0
        %561 = vmatmul.mubr.bf16.gmra.mxu0 %v436
        %v562 = vpop.f32.mrf.mxu0
        %v563 = vadd.f32 %v320, %v562
        %v564 = vpop.f32.mrf.mxu0
        %v565 = vpop.f32.mrf.mxu0
        %v566 = vadd.f32 %v320, %v565
        %v567 = vpop.f32.mrf.mxu0
        %568 = vmatprep.mubr.bf16.mxu0 0
        %569 = vmatmul.mubr.bf16.gmra.mxu0 %v439
        %v570 = vpop.f32.mrf.mxu0
        %v571 = vadd.f32 %v320, %v570
        %v572 = vpop.f32.mrf.mxu0
        %v573 = vpop.f32.mrf.mxu0
        %v574 = vadd.f32 %v320, %v573
        %v575 = vpop.f32.mrf.mxu0
        %576 = vmatprep.mubr.bf16.mxu0 0
        %577 = vmatmul.mubr.bf16.gmra.mxu0 %v442
        %v578 = vpop.f32.mrf.mxu0
        %v579 = vadd.f32 %v320, %v578
        %v580 = vpop.f32.mrf.mxu0
        %v581 = vpop.f32.mrf.mxu0
        %v582 = vadd.f32 %v320, %v581
        %v583 = vpop.f32.mrf.mxu0
        %584 = vmatprep.mubr.bf16.mxu0 0
        %585 = vmatmul.mubr.bf16.gmra.mxu0 %v445
        %v586 = vpop.f32.mrf.mxu0
        %v587 = vadd.f32 %v320, %v586
        %v588 = vpop.f32.mrf.mxu0
        %v589 = vpop.f32.mrf.mxu0
        %v590 = vadd.f32 %v320, %v589
        %v591 = vpop.f32.mrf.mxu0
        %592 = vmatprep.mubr.bf16.mxu0 0
        %593 = vmatmul.mubr.bf16.gmra.mxu0 %v448
        %v594 = vpop.f32.mrf.mxu0
        %v595 = vadd.f32 %v320, %v594
        %v596 = vpop.f32.mrf.mxu0
        %v597 = vpop.f32.mrf.mxu0
        %v598 = vadd.f32 %v320, %v597
        %v599 = vpop.f32.mrf.mxu0
        %600 = vmatprep.mubr.bf16.mxu0 0
        %601 = vmatmul.mubr.bf16.gmra.mxu0 %v451
        %v602 = vpop.f32.mrf.mxu0
        %v603 = vadd.f32 %v320, %v602
        %v604 = vpop.f32.mrf.mxu0
        %v605 = vpop.f32.mrf.mxu0
        %v606 = vadd.f32 %v320, %v605
        %v607 = vpop.f32.mrf.mxu0
        %608 = vmatprep.mubr.bf16.mxu0 0
        %609 = vmatmul.mubr.bf16.gmra.mxu0 %v454
        %v610 = vpop.f32.mrf.mxu0
        %v611 = vadd.f32 %v320, %v610
        %v612 = vpop.f32.mrf.mxu0
        %v613 = vpop.f32.mrf.mxu0
        %v614 = vadd.f32 %v320, %v613
        %v615 = vpop.f32.mrf.mxu0
        %616 = vdwg.mxu0
        %v617 = vtanh.pop %v491
        %v618 = vtanh.pop %v494
        %v619 = vtanh.pop %v499
        %v620 = vtanh.pop %v502
        %v621 = vtanh.pop %v507
        %v622 = vtanh.pop %v510
        %v623 = vtanh.pop %v515
        %v624 = vtanh.pop %v518
        %v625 = vtanh.pop %v523
        %v626 = vtanh.pop %v526
        %v627 = vtanh.pop %v531
        %v628 = vtanh.pop %v534
        %v629 = vtanh.pop %v539
        %v630 = vtanh.pop %v542
        %v631 = vtanh.pop %v547
        %v632 = vtanh.pop %v550
        %v633 = vtanh.pop %v555
        %v634 = vtanh.pop %v558
        %v635 = vtanh.pop %v563
        %v636 = vtanh.pop %v566
        %v637 = vtanh.pop %v571
        %v638 = vtanh.pop %v574
        %v639 = vtanh.pop %v579
        %v640 = vtanh.pop %v582
        %v641 = vtanh.pop %v587
        %v642 = vtanh.pop %v590
        %v643 = vtanh.pop %v595
        %v644 = vtanh.pop %v598
        %v645 = vtanh.pop %v603
        %v646 = vtanh.pop %v606
        %v647 = vtanh.pop %v611
        %v648 = vtanh.pop %v614
        %v649 = vpack.c.bf16 %v618, %v617
        %v650 = vpack.c.bf16 %v620, %v619
        %v651 = vpack.c.bf16 %v622, %v621
        %v652 = vpack.c.bf16 %v624, %v623
        %v653 = vpack.c.bf16 %v626, %v625
        %v654 = vpack.c.bf16 %v628, %v627
        %v655 = vpack.c.bf16 %v630, %v629
        %v656 = vpack.c.bf16 %v632, %v631
        %v657 = vpack.c.bf16 %v634, %v633
        %v658 = vpack.c.bf16 %v636, %v635
        %v659 = vpack.c.bf16 %v638, %v637
        %v660 = vpack.c.bf16 %v640, %v639
        %v661 = vpack.c.bf16 %v642, %v641
        %v662 = vpack.c.bf16 %v644, %v643
        %v663 = vpack.c.bf16 %v646, %v645
        %v664 = vpack.c.bf16 %v648, %v647
        %v665 = vld [vmem:[%s3] sm:$0xf]
        %v666 = vld [vmem:[%s3 + $0x4] sm:$0xf]
        %v667 = vld [vmem:[%s3 + $0x8] sm:$0xf]
        %v668 = vld [vmem:[%s3 + $0xc] sm:$0xf]
        %v669 = vld [vmem:[%s3 + $0x10] sm:$0xf]
        %v670 = vld [vmem:[%s3 + $0x14] sm:$0xf]
        %v671 = vld [vmem:[%s3 + $0x18] sm:$0xf]
        %v672 = vld [vmem:[%s3 + $0x1c] sm:$0xf]
        %v673 = vld [vmem:[%s3 + $0x20] sm:$0xf]
        %v674 = vld [vmem:[%s3 + $0x24] sm:$0xf]
        %v675 = vld [vmem:[%s3 + $0x28] sm:$0xf]
        %v676 = vld [vmem:[%s3 + $0x2c] sm:$0xf]
        %v677 = vld [vmem:[%s3 + $0x30] sm:$0xf]
        %v678 = vld [vmem:[%s3 + $0x34] sm:$0xf]
        %v679 = vld [vmem:[%s3 + $0x38] sm:$0xf]
        %v680 = vld [vmem:[%s3 + $0x3c] sm:$0xf]
        %v681 = vld [vmem:[%s4] sm:$0x1]
        %v682 = vunpack.c.l.bf16 %v681
        %v683 = vlaneseq
        %v684 = vshrl.u32 %v683, 7
        %v685 = vsub.s32 0, %v684
        %v686 = vrot.slane %v682, %v685
        %v703 = vunpack.c.l.b16 %v665
        %v704 = vunpack.c.l.b16 %v666
        %v705 = vunpack.c.l.b16 %v667
        %v706 = vunpack.c.l.b16 %v668
        %v707 = vunpack.c.l.b16 %v669
        %v708 = vunpack.c.l.b16 %v670
        %v709 = vunpack.c.l.b16 %v671
        %v710 = vunpack.c.l.b16 %v672
        %v711 = vunpack.c.l.b16 %v673
        %v712 = vunpack.c.l.b16 %v674
        %v713 = vunpack.c.l.b16 %v675
        %v714 = vunpack.c.l.b16 %v676
        %v715 = vunpack.c.l.b16 %v677
        %v716 = vunpack.c.l.b16 %v678
        %v717 = vunpack.c.l.b16 %v679
        %v718 = vunpack.c.l.b16 %v680
        %v719 = vpack.c.b16 %v704, %v703
        %v720 = vpack.c.b16 %v706, %v705
        %v721 = vpack.c.b16 %v708, %v707
        %v722 = vpack.c.b16 %v710, %v709
        %v723 = vpack.c.b16 %v712, %v711
        %v724 = vpack.c.b16 %v714, %v713
        %v725 = vpack.c.b16 %v716, %v715
        %v726 = vpack.c.b16 %v718, %v717
        %735 = vmatprep.subr.bf16.mxu0 0
        %736 = vmatpush1.bf16.msra.mxu0 %v726
        %737 = vmatprep.subr.bf16.mxu0 0
        %738 = vmatpush1.bf16.msra.mxu0 %v725
        %739 = vmatprep.subr.bf16.mxu0 0
        %740 = vmatpush1.bf16.msra.mxu0 %v724
        %741 = vmatprep.subr.bf16.mxu0 0
        %742 = vmatpush1.bf16.msra.mxu0 %v723
        %743 = vmatprep.subr.bf16.mxu0 0
        %744 = vmatpush1.bf16.msra.mxu0 %v722
        %745 = vmatprep.subr.bf16.mxu0 0
        %746 = vmatpush1.bf16.msra.mxu0 %v721
        %747 = vmatprep.subr.bf16.mxu0 0
        %748 = vmatpush1.bf16.msra.mxu0 %v720
        %749 = vmatprep.subr.bf16.mxu0 0
        %750 = vmatpush1.bf16.msra.mxu0 %v719
        %751 = vmatprep.subr.bf16.mxu0 0
        %752 = vmatpush2.bf16.msra.mxu0 0
        %753 = vmatprep.subr.bf16.mxu0 0
        %754 = vmatpush2.bf16.msra.mxu0 0
        %755 = vmatprep.subr.bf16.mxu0 0
        %756 = vmatpush2.bf16.msra.mxu0 0
        %757 = vmatprep.subr.bf16.mxu0 0
        %758 = vmatpush2.bf16.msra.mxu0 0
        %759 = vmatprep.subr.bf16.mxu0 0
        %760 = vmatpush2.bf16.msra.mxu0 0
        %761 = vmatprep.subr.bf16.mxu0 0
        %762 = vmatpush2.bf16.msra.mxu0 0
        %763 = vmatprep.subr.bf16.mxu0 0
        %764 = vmatpush2.bf16.msra.mxu0 0
        %765 = vmatprep.subr.bf16.mxu0 0
        %766 = vmatpush2.bf16.msra.mxu0 0
        %767 = vmatprep.mubr.bf16.mxu0 0
        %768 = vmatmul.mubr.bf16.gmra.mxu0 %v649
        %v769 = vpop.f32.mrf.mxu0
        %v770 = vadd.f32 %v686, %v769
        %v771 = vpop.f32.mrf.mxu0
        %v772 = vpop.f32.mrf.mxu0
        %v773 = vadd.f32 %v686, %v772
        %v774 = vpop.f32.mrf.mxu0
        %775 = vmatprep.mubr.bf16.mxu0 0
        %776 = vmatmul.mubr.bf16.gmra.mxu0 %v650
        %v777 = vpop.f32.mrf.mxu0
        %v778 = vadd.f32 %v686, %v777
        %v779 = vpop.f32.mrf.mxu0
        %v780 = vpop.f32.mrf.mxu0
        %v781 = vadd.f32 %v686, %v780
        %v782 = vpop.f32.mrf.mxu0
        %783 = vmatprep.mubr.bf16.mxu0 0
        %784 = vmatmul.mubr.bf16.gmra.mxu0 %v651
        %v785 = vpop.f32.mrf.mxu0
        %v786 = vadd.f32 %v686, %v785
        %v787 = vpop.f32.mrf.mxu0
        %v788 = vpop.f32.mrf.mxu0
        %v789 = vadd.f32 %v686, %v788
        %v790 = vpop.f32.mrf.mxu0
        %791 = vmatprep.mubr.bf16.mxu0 0
        %792 = vmatmul.mubr.bf16.gmra.mxu0 %v652
        %v793 = vpop.f32.mrf.mxu0
        %v794 = vadd.f32 %v686, %v793
        %v795 = vpop.f32.mrf.mxu0
        %v796 = vpop.f32.mrf.mxu0
        %v797 = vadd.f32 %v686, %v796
        %v798 = vpop.f32.mrf.mxu0
        %799 = vmatprep.mubr.bf16.mxu0 0
        %800 = vmatmul.mubr.bf16.gmra.mxu0 %v653
        %v801 = vpop.f32.mrf.mxu0
        %v802 = vadd.f32 %v686, %v801
        %v803 = vpop.f32.mrf.mxu0
        %v804 = vpop.f32.mrf.mxu0
        %v805 = vadd.f32 %v686, %v804
        %v806 = vpop.f32.mrf.mxu0
        %807 = vmatprep.mubr.bf16.mxu0 0
        %808 = vmatmul.mubr.bf16.gmra.mxu0 %v654
        %v809 = vpop.f32.mrf.mxu0
        %v810 = vadd.f32 %v686, %v809
        %v811 = vpop.f32.mrf.mxu0
        %v812 = vpop.f32.mrf.mxu0
        %v813 = vadd.f32 %v686, %v812
        %v814 = vpop.f32.mrf.mxu0
        %815 = vmatprep.mubr.bf16.mxu0 0
        %816 = vmatmul.mubr.bf16.gmra.mxu0 %v655
        %v817 = vpop.f32.mrf.mxu0
        %v818 = vadd.f32 %v686, %v817
        %v819 = vpop.f32.mrf.mxu0
        %v820 = vpop.f32.mrf.mxu0
        %v821 = vadd.f32 %v686, %v820
        %v822 = vpop.f32.mrf.mxu0
        %823 = vmatprep.mubr.bf16.mxu0 0
        %824 = vmatmul.mubr.bf16.gmra.mxu0 %v656
        %v825 = vpop.f32.mrf.mxu0
        %v826 = vadd.f32 %v686, %v825
        %v827 = vpop.f32.mrf.mxu0
        %v828 = vpop.f32.mrf.mxu0
        %v829 = vadd.f32 %v686, %v828
        %v830 = vpop.f32.mrf.mxu0
        %831 = vmatprep.mubr.bf16.mxu0 0
        %832 = vmatmul.mubr.bf16.gmra.mxu0 %v657
        %v833 = vpop.f32.mrf.mxu0
        %v834 = vadd.f32 %v686, %v833
        %v835 = vpop.f32.mrf.mxu0
        %v836 = vpop.f32.mrf.mxu0
        %v837 = vadd.f32 %v686, %v836
        %v838 = vpop.f32.mrf.mxu0
        %839 = vmatprep.mubr.bf16.mxu0 0
        %840 = vmatmul.mubr.bf16.gmra.mxu0 %v658
        %v841 = vpop.f32.mrf.mxu0
        %v842 = vadd.f32 %v686, %v841
        %v843 = vpop.f32.mrf.mxu0
        %v844 = vpop.f32.mrf.mxu0
        %v845 = vadd.f32 %v686, %v844
        %v846 = vpop.f32.mrf.mxu0
        %847 = vmatprep.mubr.bf16.mxu0 0
        %848 = vmatmul.mubr.bf16.gmra.mxu0 %v659
        %v849 = vpop.f32.mrf.mxu0
        %v850 = vadd.f32 %v686, %v849
        %v851 = vpop.f32.mrf.mxu0
        %v852 = vpop.f32.mrf.mxu0
        %v853 = vadd.f32 %v686, %v852
        %v854 = vpop.f32.mrf.mxu0
        %855 = vmatprep.mubr.bf16.mxu0 0
        %856 = vmatmul.mubr.bf16.gmra.mxu0 %v660
        %v857 = vpop.f32.mrf.mxu0
        %v858 = vadd.f32 %v686, %v857
        %v859 = vpop.f32.mrf.mxu0
        %v860 = vpop.f32.mrf.mxu0
        %v861 = vadd.f32 %v686, %v860
        %v862 = vpop.f32.mrf.mxu0
        %863 = vmatprep.mubr.bf16.mxu0 0
        %864 = vmatmul.mubr.bf16.gmra.mxu0 %v661
        %v865 = vpop.f32.mrf.mxu0
        %v866 = vadd.f32 %v686, %v865
        %v867 = vpop.f32.mrf.mxu0
        %v868 = vpop.f32.mrf.mxu0
        %v869 = vadd.f32 %v686, %v868
        %v870 = vpop.f32.mrf.mxu0
        %871 = vmatprep.mubr.bf16.mxu0 0
        %872 = vmatmul.mubr.bf16.gmra.mxu0 %v662
        %v873 = vpop.f32.mrf.mxu0
        %v874 = vadd.f32 %v686, %v873
        %v875 = vpop.f32.mrf.mxu0
        %v876 = vpop.f32.mrf.mxu0
        %v877 = vadd.f32 %v686, %v876
        %v878 = vpop.f32.mrf.mxu0
        %879 = vmatprep.mubr.bf16.mxu0 0
        %880 = vmatmul.mubr.bf16.gmra.mxu0 %v663
        %v881 = vpop.f32.mrf.mxu0
        %v882 = vadd.f32 %v686, %v881
        %v883 = vpop.f32.mrf.mxu0
        %v884 = vpop.f32.mrf.mxu0
        %v885 = vadd.f32 %v686, %v884
        %v886 = vpop.f32.mrf.mxu0
        %887 = vmatprep.mubr.bf16.mxu0 0
        %888 = vmatmul.mubr.bf16.gmra.mxu0 %v664
        %v889 = vpop.f32.mrf.mxu0
        %v890 = vadd.f32 %v686, %v889
        %v891 = vpop.f32.mrf.mxu0
        %v892 = vpop.f32.mrf.mxu0
        %v893 = vadd.f32 %v686, %v892
        %v894 = vpop.f32.mrf.mxu0
        %895 = vdwg.mxu0
        %v896 = vtanh.pop %v770
        %v897 = vtanh.pop %v773
        %v898 = vtanh.pop %v778
        %v899 = vtanh.pop %v781
        %v900 = vtanh.pop %v786
        %v901 = vtanh.pop %v789
        %v902 = vtanh.pop %v794
        %v903 = vtanh.pop %v797
        %v904 = vtanh.pop %v802
        %v905 = vtanh.pop %v805
        %v906 = vtanh.pop %v810
        %v907 = vtanh.pop %v813
        %v908 = vtanh.pop %v818
        %v909 = vtanh.pop %v821
        %v910 = vtanh.pop %v826
        %v911 = vtanh.pop %v829
        %v912 = vtanh.pop %v834
        %v913 = vtanh.pop %v837
        %v914 = vtanh.pop %v842
        %v915 = vtanh.pop %v845
        %v916 = vtanh.pop %v850
        %v917 = vtanh.pop %v853
        %v918 = vtanh.pop %v858
        %v919 = vtanh.pop %v861
        %v920 = vtanh.pop %v866
        %v921 = vtanh.pop %v869
        %v922 = vtanh.pop %v874
        %v923 = vtanh.pop %v877
        %v924 = vtanh.pop %v882
        %v925 = vtanh.pop %v885
        %v926 = vtanh.pop %v890
        %v927 = vtanh.pop %v893
        %v928 = vpack.c.bf16 %v897, %v896
        %v929 = vpack.c.bf16 %v899, %v898
        %v930 = vpack.c.bf16 %v901, %v900
        %v931 = vpack.c.bf16 %v903, %v902
        %v932 = vpack.c.bf16 %v905, %v904
        %v933 = vpack.c.bf16 %v907, %v906
        %v934 = vpack.c.bf16 %v909, %v908
        %v935 = vpack.c.bf16 %v911, %v910
        %v936 = vpack.c.bf16 %v913, %v912
        %v937 = vpack.c.bf16 %v915, %v914
        %v938 = vpack.c.bf16 %v917, %v916
        %v939 = vpack.c.bf16 %v919, %v918
        %v940 = vpack.c.bf16 %v921, %v920
        %v941 = vpack.c.bf16 %v923, %v922
        %v942 = vpack.c.bf16 %v925, %v924
        %v943 = vpack.c.bf16 %v927, %v926
        %v944 = vld [vmem:[%s5] sm:$0xf]
        %v945 = vld [vmem:[%s5 + $0x4] sm:$0xf]
        %v946 = vld [vmem:[%s5 + $0x8] sm:$0xf]
        %v947 = vld [vmem:[%s5 + $0xc] sm:$0xf]
        %v948 = vld [vmem:[%s5 + $0x10] sm:$0xf]
        %v949 = vld [vmem:[%s5 + $0x14] sm:$0xf]
        %v950 = vld [vmem:[%s5 + $0x18] sm:$0xf]
        %v951 = vld [vmem:[%s5 + $0x1c] sm:$0xf]
        %v952 = vld [vmem:[%s5 + $0x20] sm:$0xf]
        %v953 = vld [vmem:[%s5 + $0x24] sm:$0xf]
        %v954 = vld [vmem:[%s5 + $0x28] sm:$0xf]
        %v955 = vld [vmem:[%s5 + $0x2c] sm:$0xf]
        %v956 = vld [vmem:[%s5 + $0x30] sm:$0xf]
        %v957 = vld [vmem:[%s5 + $0x34] sm:$0xf]
        %v958 = vld [vmem:[%s5 + $0x38] sm:$0xf]
        %v959 = vld [vmem:[%s5 + $0x3c] sm:$0xf]
        %v960 = vld [vmem:[%s6] sm:$0x1]
        %v961 = vunpack.c.l.bf16 %v960
        %v962 = vlaneseq
        %v963 = vshrl.u32 %v962, 7
        %v964 = vsub.s32 0, %v963
        %v965 = vrot.slane %v961, %v964
        %v982 = vunpack.c.l.b16 %v944
        %v983 = vunpack.c.l.b16 %v945
        %v984 = vunpack.c.l.b16 %v946
        %v985 = vunpack.c.l.b16 %v947
        %v986 = vunpack.c.l.b16 %v948
        %v987 = vunpack.c.l.b16 %v949
        %v988 = vunpack.c.l.b16 %v950
        %v989 = vunpack.c.l.b16 %v951
        %v990 = vunpack.c.l.b16 %v952
        %v991 = vunpack.c.l.b16 %v953
        %v992 = vunpack.c.l.b16 %v954
        %v993 = vunpack.c.l.b16 %v955
        %v994 = vunpack.c.l.b16 %v956
        %v995 = vunpack.c.l.b16 %v957
        %v996 = vunpack.c.l.b16 %v958
        %v997 = vunpack.c.l.b16 %v959
        %v998 = vpack.c.b16 %v983, %v982
        %v999 = vpack.c.b16 %v985, %v984
        %v1000 = vpack.c.b16 %v987, %v986
        %v1001 = vpack.c.b16 %v989, %v988
        %v1002 = vpack.c.b16 %v991, %v990
        %v1003 = vpack.c.b16 %v993, %v992
        %v1004 = vpack.c.b16 %v995, %v994
        %v1005 = vpack.c.b16 %v997, %v996
        %1014 = vmatprep.subr.bf16.mxu0 0
        %1015 = vmatpush1.bf16.msra.mxu0 %v1005
        %1016 = vmatprep.subr.bf16.mxu0 0
        %1017 = vmatpush1.bf16.msra.mxu0 %v1004
        %1018 = vmatprep.subr.bf16.mxu0 0
        %1019 = vmatpush1.bf16.msra.mxu0 %v1003
        %1020 = vmatprep.subr.bf16.mxu0 0
        %1021 = vmatpush1.bf16.msra.mxu0 %v1002
        %1022 = vmatprep.subr.bf16.mxu0 0
        %1023 = vmatpush1.bf16.msra.mxu0 %v1001
        %1024 = vmatprep.subr.bf16.mxu0 0
        %1025 = vmatpush1.bf16.msra.mxu0 %v1000
        %1026 = vmatprep.subr.bf16.mxu0 0
        %1027 = vmatpush1.bf16.msra.mxu0 %v999
        %1028 = vmatprep.subr.bf16.mxu0 0
        %1029 = vmatpush1.bf16.msra.mxu0 %v998
        %1030 = vmatprep.subr.bf16.mxu0 0
        %1031 = vmatpush2.bf16.msra.mxu0 0
        %1032 = vmatprep.subr.bf16.mxu0 0
        %1033 = vmatpush2.bf16.msra.mxu0 0
        %1034 = vmatprep.subr.bf16.mxu0 0
        %1035 = vmatpush2.bf16.msra.mxu0 0
        %1036 = vmatprep.subr.bf16.mxu0 0
        %1037 = vmatpush2.bf16.msra.mxu0 0
        %1038 = vmatprep.subr.bf16.mxu0 0
        %1039 = vmatpush2.bf16.msra.mxu0 0
        %1040 = vmatprep.subr.bf16.mxu0 0
        %1041 = vmatpush2.bf16.msra.mxu0 0
        %1042 = vmatprep.subr.bf16.mxu0 0
        %1043 = vmatpush2.bf16.msra.mxu0 0
        %1044 = vmatprep.subr.bf16.mxu0 0
        %1045 = vmatpush2.bf16.msra.mxu0 0
        %1046 = vmatprep.mubr.bf16.mxu0 0
        %1047 = vmatmul.mubr.bf16.gmra.mxu0 %v928
        %v1048 = vpop.f32.mrf.mxu0
        %v1049 = vadd.f32 %v965, %v1048
        %v1050 = vpop.f32.mrf.mxu0
        %v1051 = vpop.f32.mrf.mxu0
        %v1052 = vadd.f32 %v965, %v1051
        %v1053 = vpop.f32.mrf.mxu0
        %1054 = vmatprep.mubr.bf16.mxu0 0
        %1055 = vmatmul.mubr.bf16.gmra.mxu0 %v929
        %v1056 = vpop.f32.mrf.mxu0
        %v1057 = vadd.f32 %v965, %v1056
        %v1058 = vpop.f32.mrf.mxu0
        %v1059 = vpop.f32.mrf.mxu0
        %v1060 = vadd.f32 %v965, %v1059
        %v1061 = vpop.f32.mrf.mxu0
        %1062 = vmatprep.mubr.bf16.mxu0 0
        %1063 = vmatmul.mubr.bf16.gmra.mxu0 %v930
        %v1064 = vpop.f32.mrf.mxu0
        %v1065 = vadd.f32 %v965, %v1064
        %v1066 = vpop.f32.mrf.mxu0
        %v1067 = vpop.f32.mrf.mxu0
        %v1068 = vadd.f32 %v965, %v1067
        %v1069 = vpop.f32.mrf.mxu0
        %1070 = vmatprep.mubr.bf16.mxu0 0
        %1071 = vmatmul.mubr.bf16.gmra.mxu0 %v931
        %v1072 = vpop.f32.mrf.mxu0
        %v1073 = vadd.f32 %v965, %v1072
        %v1074 = vpop.f32.mrf.mxu0
        %v1075 = vpop.f32.mrf.mxu0
        %v1076 = vadd.f32 %v965, %v1075
        %v1077 = vpop.f32.mrf.mxu0
        %1078 = vmatprep.mubr.bf16.mxu0 0
        %1079 = vmatmul.mubr.bf16.gmra.mxu0 %v932
        %v1080 = vpop.f32.mrf.mxu0
        %v1081 = vadd.f32 %v965, %v1080
        %v1082 = vpop.f32.mrf.mxu0
        %v1083 = vpop.f32.mrf.mxu0
        %v1084 = vadd.f32 %v965, %v1083
        %v1085 = vpop.f32.mrf.mxu0
        %1086 = vmatprep.mubr.bf16.mxu0 0
        %1087 = vmatmul.mubr.bf16.gmra.mxu0 %v933
        %v1088 = vpop.f32.mrf.mxu0
        %v1089 = vadd.f32 %v965, %v1088
        %v1090 = vpop.f32.mrf.mxu0
        %v1091 = vpop.f32.mrf.mxu0
        %v1092 = vadd.f32 %v965, %v1091
        %v1093 = vpop.f32.mrf.mxu0
        %1094 = vmatprep.mubr.bf16.mxu0 0
        %1095 = vmatmul.mubr.bf16.gmra.mxu0 %v934
        %v1096 = vpop.f32.mrf.mxu0
        %v1097 = vadd.f32 %v965, %v1096
        %v1098 = vpop.f32.mrf.mxu0
        %v1099 = vpop.f32.mrf.mxu0
        %v1100 = vadd.f32 %v965, %v1099
        %v1101 = vpop.f32.mrf.mxu0
        %1102 = vmatprep.mubr.bf16.mxu0 0
        %1103 = vmatmul.mubr.bf16.gmra.mxu0 %v935
        %v1104 = vpop.f32.mrf.mxu0
        %v1105 = vadd.f32 %v965, %v1104
        %v1106 = vpop.f32.mrf.mxu0
        %v1107 = vpop.f32.mrf.mxu0
        %v1108 = vadd.f32 %v965, %v1107
        %v1109 = vpop.f32.mrf.mxu0
        %1110 = vmatprep.mubr.bf16.mxu0 0
        %1111 = vmatmul.mubr.bf16.gmra.mxu0 %v936
        %v1112 = vpop.f32.mrf.mxu0
        %v1113 = vadd.f32 %v965, %v1112
        %v1114 = vpop.f32.mrf.mxu0
        %v1115 = vpop.f32.mrf.mxu0
        %v1116 = vadd.f32 %v965, %v1115
        %v1117 = vpop.f32.mrf.mxu0
        %1118 = vmatprep.mubr.bf16.mxu0 0
        %1119 = vmatmul.mubr.bf16.gmra.mxu0 %v937
        %v1120 = vpop.f32.mrf.mxu0
        %v1121 = vadd.f32 %v965, %v1120
        %v1122 = vpop.f32.mrf.mxu0
        %v1123 = vpop.f32.mrf.mxu0
        %v1124 = vadd.f32 %v965, %v1123
        %v1125 = vpop.f32.mrf.mxu0
        %1126 = vmatprep.mubr.bf16.mxu0 0
        %1127 = vmatmul.mubr.bf16.gmra.mxu0 %v938
        %v1128 = vpop.f32.mrf.mxu0
        %v1129 = vadd.f32 %v965, %v1128
        %v1130 = vpop.f32.mrf.mxu0
        %v1131 = vpop.f32.mrf.mxu0
        %v1132 = vadd.f32 %v965, %v1131
        %v1133 = vpop.f32.mrf.mxu0
        %1134 = vmatprep.mubr.bf16.mxu0 0
        %1135 = vmatmul.mubr.bf16.gmra.mxu0 %v939
        %v1136 = vpop.f32.mrf.mxu0
        %v1137 = vadd.f32 %v965, %v1136
        %v1138 = vpop.f32.mrf.mxu0
        %v1139 = vpop.f32.mrf.mxu0
        %v1140 = vadd.f32 %v965, %v1139
        %v1141 = vpop.f32.mrf.mxu0
        %1142 = vmatprep.mubr.bf16.mxu0 0
        %1143 = vmatmul.mubr.bf16.gmra.mxu0 %v940
        %v1144 = vpop.f32.mrf.mxu0
        %v1145 = vadd.f32 %v965, %v1144
        %v1146 = vpop.f32.mrf.mxu0
        %v1147 = vpop.f32.mrf.mxu0
        %v1148 = vadd.f32 %v965, %v1147
        %v1149 = vpop.f32.mrf.mxu0
        %1150 = vmatprep.mubr.bf16.mxu0 0
        %1151 = vmatmul.mubr.bf16.gmra.mxu0 %v941
        %v1152 = vpop.f32.mrf.mxu0
        %v1153 = vadd.f32 %v965, %v1152
        %v1154 = vpop.f32.mrf.mxu0
        %v1155 = vpop.f32.mrf.mxu0
        %v1156 = vadd.f32 %v965, %v1155
        %v1157 = vpop.f32.mrf.mxu0
        %1158 = vmatprep.mubr.bf16.mxu0 0
        %1159 = vmatmul.mubr.bf16.gmra.mxu0 %v942
        %v1160 = vpop.f32.mrf.mxu0
        %v1161 = vadd.f32 %v965, %v1160
        %v1162 = vpop.f32.mrf.mxu0
        %v1163 = vpop.f32.mrf.mxu0
        %v1164 = vadd.f32 %v965, %v1163
        %v1165 = vpop.f32.mrf.mxu0
        %1166 = vmatprep.mubr.bf16.mxu0 0
        %1167 = vmatmul.mubr.bf16.gmra.mxu0 %v943
        %v1168 = vpop.f32.mrf.mxu0
        %v1169 = vadd.f32 %v965, %v1168
        %v1170 = vpop.f32.mrf.mxu0
        %v1171 = vpop.f32.mrf.mxu0
        %v1172 = vadd.f32 %v965, %v1171
        %v1173 = vpop.f32.mrf.mxu0
        %1174 = vdwg.mxu0
        %1175 = vst [vmem:[%s272] sm:$0xff] %v1049
        %1176 = vst [vmem:[%s272 + $0x8] sm:$0xff] %v1052
        %1177 = vst [vmem:[%s272 + $0x10] sm:$0xff] %v1057
        %1178 = vst [vmem:[%s272 + $0x18] sm:$0xff] %v1060
        %1179 = vst [vmem:[%s272 + $0x20] sm:$0xff] %v1065
        %1180 = vst [vmem:[%s272 + $0x28] sm:$0xff] %v1068
        %1181 = vst [vmem:[%s272 + $0x30] sm:$0xff] %v1073
        %1182 = vst [vmem:[%s272 + $0x38] sm:$0xff] %v1076
        %1183 = vst [vmem:[%s272 + $0x40] sm:$0xff] %v1081
        %1184 = vst [vmem:[%s272 + $0x48] sm:$0xff] %v1084
        %1185 = vst [vmem:[%s272 + $0x50] sm:$0xff] %v1089
        %1186 = vst [vmem:[%s272 + $0x58] sm:$0xff] %v1092
        %1187 = vst [vmem:[%s272 + $0x60] sm:$0xff] %v1097
        %1188 = vst [vmem:[%s272 + $0x68] sm:$0xff] %v1100
        %1189 = vst [vmem:[%s272 + $0x70] sm:$0xff] %v1105
        %1190 = vst [vmem:[%s272 + $0x78] sm:$0xff] %v1108
        %1191 = vst [vmem:[%s272 + $0x80] sm:$0xff] %v1113
        %1192 = vst [vmem:[%s272 + $0x88] sm:$0xff] %v1116
        %1193 = vst [vmem:[%s272 + $0x90] sm:$0xff] %v1121
        %1194 = vst [vmem:[%s272 + $0x98] sm:$0xff] %v1124
        %1195 = vst [vmem:[%s272 + $0xa0] sm:$0xff] %v1129
        %1196 = vst [vmem:[%s272 + $0xa8] sm:$0xff] %v1132
        %1197 = vst [vmem:[%s272 + $0xb0] sm:$0xff] %v1137
        %1198 = vst [vmem:[%s272 + $0xb8] sm:$0xff] %v1140
        %1199 = vst [vmem:[%s272 + $0xc0] sm:$0xff] %v1145
        %1200 = vst [vmem:[%s272 + $0xc8] sm:$0xff] %v1148
        %1201 = vst [vmem:[%s272 + $0xd0] sm:$0xff] %v1153
        %1202 = vst [vmem:[%s272 + $0xd8] sm:$0xff] %v1156
        %1203 = vst [vmem:[%s272 + $0xe0] sm:$0xff] %v1161
        %1204 = vst [vmem:[%s272 + $0xe8] sm:$0xff] %v1164
        %1205 = vst [vmem:[%s272 + $0xf0] sm:$0xff] %v1169
        %1206 = vst [vmem:[%s272 + $0xf8] sm:$0xff] %v1172
        %s1207 = sand.u32 %s181, 1
        %s1208 = scalar_lea.sflag [#allocation3], %s1207
        %s1209 = sand.u32 %s181, 1
        %s1210 = smul.addr %s1209, 256
        %s1211 = scalar_lea.vmem [#allocation2], %s1210
        // Predicated region
        $region49: #{tpu_custom_call.1} parent=47 // pred_check
          %p1212 = pneg %p191
        $region50: #{tpu_custom_call.1} parent=47 // pred_check_branch
          %1214 = sbr.rel (%p1212) target = $region52
        $region51: #{tpu_custom_call.1} parent=47 // pred_region
          %s1215 = smul.u32 32, %s21
          %s1217 = ssub.s32 4096, 4096
          %1218 = vsyncadd %s1208, %s1217
          %s1219 = smul.addr %s1215, 128
          %s1220 = scalar_lea.hbm %s7, %s1219
          %s1221 = sshll.u32 %s1211, 4
          %s1222 = int_to_ptr.vmem [resolvable:$true] %s1221
          %1227 = dma.vmem_to_hbm [thread:$0]  %s1222, 4096, %s1220, %s1208, 128, 128, 8
        $region52: #{tpu_custom_call.1} parent=47 // pred_fallthru
          _
      $region48: #{tpu_custom_call.1} parent=5 // pred_fallthru
        _
      %p1228 = scmp.le.s32.totalorder 2, %s16
      // Predicated region
      $region53: #{tpu_custom_call.1} parent=5 // pred_check
        %p1229 = pneg %p1228
      $region54: #{tpu_custom_call.1} parent=5 // pred_check_branch
        %1231 = sbr.rel (%p1229) target = $region56
      $region55: #{tpu_custom_call.1} parent=5 // pred_region
        %s1232 = ssub.s32 %s16, 2
        // Predicated region
        $region57: #{tpu_custom_call.1} parent=55 // pred_check
          %p1233 = pneg %p197
        $region58: #{tpu_custom_call.1} parent=55 // pred_check_branch
          %1235 = sbr.rel (%p1233) target = $region60
        $region59: #{tpu_custom_call.1} parent=55 // pred_region
          %s1236 = sand.u32 %s182, 1
          %s1237 = scalar_lea.sflag [#allocation3], %s1236
          %s1238 = sand.u32 %s182, 1
          %s1239 = smul.addr %s1238, 256
          %s1240 = scalar_lea.vmem [#allocation2], %s1239
          %1241 = dma.done %s1237, 4096
        $region60: #{tpu_custom_call.1} parent=55 // pred_fallthru
          _
      $region56: #{tpu_custom_call.1} parent=5 // pred_fallthru
        _
    $region6: #{tpu_custom_call.1} parent=1 // loop_footer
      %s20 = sadd.s32 1, %s16
    $region7: #{tpu_custom_call.1} parent=1 // loop_footer_branch
      %15 = sbr.rel target = $region3
    $region8: #{tpu_custom_call.1} parent=1 // loop_exit
      _
    %1242 = vsyncpa [#allocation3], 1
    %s1243 = scalar_lea.sflag [#allocation3], 1
    %1244 = vsyncpa %s1243, 1

</llo_original>
